<compile_context>
chip_gen: v6e
topology: v6e:2x2x1
jax: 0.10.0
libtpu: 0.0.40
codegen_flags: <defaults>
</compile_context>

<pallas_src>
import functools

import jax
import jax.numpy as jnp
from jax.experimental import pallas as pl
from jax.experimental.pallas import tpu as pltpu

HIDDEN = 64                # per-network hidden size fixed by the PyTorch module
FUSED_HIDDEN = 2 * HIDDEN  # actor hidden || critic hidden = 128 lanes


def _round_up(x, m):
    return (x + m - 1) // m * m


def _cdiv(a, b):
    return -(-a // b)


# --------------------------------------------------------------------------- #
# Kernel
# --------------------------------------------------------------------------- #
def _actor_critic_kernel(
    x_ref, w1_ref, b1_ref, w2_ref, b2_ref, w3_ref, b3_ref, out_ref,
    *, continuous: bool, action_dim: int,
):
    # Fused actor+critic: Linear -> Tanh -> Linear -> Tanh -> Linear -> head.
    # Matmuls in bf16 (MXU), accumulation + activations in f32 (VPU/EUP).
    x = x_ref[...]
    if x.dtype != jnp.bfloat16:        # skip the cast when the producer is bf16
        x = x.astype(jnp.bfloat16)
    h1 = jnp.tanh(
        jnp.dot(x, w1_ref[...], preferred_element_type=jnp.float32) + b1_ref[...]
    )
    h2 = jnp.tanh(
        jnp.dot(h1.astype(jnp.bfloat16), w2_ref[...],
                preferred_element_type=jnp.float32) + b2_ref[...]
    )
    raw = (
        jnp.dot(h2.astype(jnp.bfloat16), w3_ref[...],
                preferred_element_type=jnp.float32) + b3_ref[...]
    )
    # raw lanes: [0:action_dim] actor logits, [action_dim] critic value, rest 0.

    lane = jax.lax.broadcasted_iota(jnp.int32, raw.shape, dimension=1)
    actor_mask = lane < action_dim

    if continuous:
        # Continuous action head: Tanh on the actor lanes (action mean).
        head = jnp.tanh(raw)
    else:
        # Discrete action head: Softmax over actor lanes only.  Padded lanes are
        # masked to a huge negative so they contribute exp() == 0 to the denom.
        masked = jnp.where(actor_mask, raw, jnp.float32(-1e30))
        m = jnp.max(masked, axis=-1, keepdims=True)
        e = jnp.where(actor_mask, jnp.exp(masked - m), jnp.float32(0.0))
        denom = jnp.sum(e, axis=-1, keepdims=True)
        # Exact reciprocal: probabilities must sum to 1 for downstream
        # log_prob / entropy; the ~1e-3 error of approx=True broke that.
        head = e * pl.reciprocal(denom, approx=False)

    # Lane-dense store (bf16 slab): actor lanes get the head output, lane
    # `action_dim` keeps the raw critic value, remaining padded lanes stay 0.
    out_ref[...] = jnp.where(actor_mask, head, raw).astype(out_ref.dtype)


# --------------------------------------------------------------------------- #
# Wrapper
# --------------------------------------------------------------------------- #
def actor_critic_forward(state, fused, *, continuous: bool, block_b: int = 2048,
                         out_dtype=jnp.bfloat16):
    """Fused actor+critic forward.

    Returns (actor_out, state_value) in f32:
      actor_out   : [B, action_dim] (softmax probs if discrete, tanh mean if continuous)
      state_value : [B, 1]
    """
    B, state_dim = state.shape
    action_dim = int(fused["action_dim"])
    out_lanes = fused["w3"].shape[1]

    # Tile choice (perf review):
    #  * large tiles (default 2048) so we are not per-grid-step-overhead bound,
    #  * balanced tiles to minimize batch padding,
    #  * >=2 grid steps when B allows so v7x's two TensorCores both get work.
    n_tiles = max(_cdiv(B, block_b), 2 if B >= 16 else 1)
    tb = _round_up(_cdiv(B, n_tiles), 8)
    b_pad = _round_up(B, tb)
    if b_pad != B:
        state = jnp.pad(state, ((0, b_pad - B), (0, 0)))
    n_tiles = b_pad // tb

    kernel = functools.partial(
        _actor_critic_kernel, continuous=continuous, action_dim=action_dim
    )

    def resident(shape):
        # Constant block index + single buffer: parameters are DMA'd once and
        # stay resident in VMEM across grid steps (no redundant double buffer).
        return pl.BlockSpec(shape, lambda i: (0, 0), pipeline_mode=pl.Buffered(1))

    state_bytes = state.dtype.itemsize
    out_bytes = jnp.dtype(out_dtype).itemsize
    weight_bytes = sum(int(v.size) * v.dtype.itemsize
                       for k, v in fused.items() if k != "action_dim")

    # VMEM budget: double-buffered streamed I/O + f32 intermediates + weights
    # + headroom.  Floor 32 MiB, cap 48 MiB (safe inside v7x's 64 MiB VMEM).
    io_bytes = 2 * tb * (state_dim * state_bytes + out_lanes * out_bytes)
    inter_bytes = 3 * tb * FUSED_HIDDEN * 4
    vmem_limit = min(max(io_bytes + inter_bytes + weight_bytes + (4 << 20),
                         32 << 20), 48 << 20)

    cost = pl.CostEstimate(
        flops=2 * b_pad * FUSED_HIDDEN * (state_dim + FUSED_HIDDEN + out_lanes),
        transcendentals=b_pad * (2 * FUSED_HIDDEN + out_lanes),
        bytes_accessed=b_pad * (state_dim * state_bytes + out_lanes * out_bytes)
                       + weight_bytes,
    )

    out = pl.pallas_call(
        kernel,
        out_shape=jax.ShapeDtypeStruct((b_pad, out_lanes), out_dtype),
        grid_spec=pltpu.PrefetchScalarGridSpec(
            num_scalar_prefetch=0,
            grid=(n_tiles,),
            in_specs=[
                pl.BlockSpec((tb, state_dim), lambda i: (i, 0)),
                resident(fused["w1"].shape), resident(fused["b1"].shape),
                resident(fused["w2"].shape), resident(fused["b2"].shape),
                resident(fused["w3"].shape), resident(fused["b3"].shape),
            ],
            out_specs=pl.BlockSpec((tb, out_lanes), lambda i: (i, 0)),
        ),
        compiler_params=pltpu.CompilerParams(
            dimension_semantics=("parallel",),
            vmem_limit_bytes=int(vmem_limit),
        ),
        cost_estimate=cost,
    )(state, fused["w1"], fused["b1"], fused["w2"], fused["b2"],
      fused["w3"], fused["b3"])

    actor_out = out[:B, :action_dim].astype(jnp.float32)
    value = out[:B, action_dim:action_dim + 1].astype(jnp.float32)
    return actor_out, value


# --------------------------------------------------------------------------- #
# Parameter construction (plain JAX glue)
# --------------------------------------------------------------------------- #
def init_raw_params(key, state_dim, action_dim, hidden=HIDDEN):
    """nn.Linear-style init (uniform +/- 1/sqrt(fan_in)); weights stored [in, out]."""
    def linear(k, fan_in, fan_out):
        kw, kb = jax.random.split(k)
        bound = 1.0 / jnp.sqrt(fan_in)
        w = jax.random.uniform(kw, (fan_in, fan_out), jnp.float32, -bound, bound)
        b = jax.random.uniform(kb, (1, fan_out), jnp.float32, -bound, bound)
        return w, b

    keys = jax.random.split(key, 6)
    aw1, ab1 = linear(keys[0], state_dim, hidden)
    aw2, ab2 = linear(keys[1], hidden, hidden)
    aw3, ab3 = linear(keys[2], hidden, action_dim)
    cw1, cb1 = linear(keys[3], state_dim, hidden)
    cw2, cb2 = linear(keys[4], hidden, hidden)
    cw3, cb3 = linear(keys[5], hidden, 1)
    return dict(
        aw1=aw1, ab1=ab1, aw2=aw2, ab2=ab2, aw3=aw3, ab3=ab3,
        cw1=cw1, cb1=cb1, cw2=cw2, cb2=cb2, cw3=cw3, cb3=cb3,
    )


def fuse_params(raw, *, matmul_dtype=jnp.bfloat16):
    """Fuse actor+critic weights into 128-lane (block-diagonal) matmul operands."""
    state_dim, hidden = raw["aw1"].shape
    action_dim = raw["aw3"].shape[1]
    fused_hidden = 2 * hidden
    out_lanes = max(128, _round_up(action_dim + 1, 128))

    w1 = jnp.concatenate([raw["aw1"], raw["cw1"]], axis=1)            # [S, 128]
    b1 = jnp.concatenate([raw["ab1"], raw["cb1"]], axis=1)            # [1, 128]

    w2 = jnp.zeros((fused_hidden, fused_hidden), jnp.float32)
    w2 = w2.at[:hidden, :hidden].set(raw["aw2"])
    w2 = w2.at[hidden:, hidden:].set(raw["cw2"])                      # [128, 128]
    b2 = jnp.concatenate([raw["ab2"], raw["cb2"]], axis=1)            # [1, 128]

    w3 = jnp.zeros((fused_hidden, out_lanes), jnp.float32)
    w3 = w3.at[:hidden, :action_dim].set(raw["aw3"])
    w3 = w3.at[hidden:, action_dim:action_dim + 1].set(raw["cw3"])    # [128, 128]
    b3 = jnp.zeros((1, out_lanes), jnp.float32)
    b3 = b3.at[:, :action_dim].set(raw["ab3"])
    b3 = b3.at[:, action_dim:action_dim + 1].set(raw["cb3"])          # [1, 128]

    return dict(
        w1=w1.astype(matmul_dtype), b1=b1,
        w2=w2.astype(matmul_dtype), b2=b2,
        w3=w3.astype(matmul_dtype), b3=b3,
        action_dim=action_dim,
    )


def _reference(state, raw, *, continuous):
    h = jnp.tanh(state @ raw["aw1"] + raw["ab1"])
    h = jnp.tanh(h @ raw["aw2"] + raw["ab2"])
    logits = h @ raw["aw3"] + raw["ab3"]
    actor_out = jnp.tanh(logits) if continuous else jax.nn.softmax(logits, axis=-1)
    c = jnp.tanh(state @ raw["cw1"] + raw["cb1"])
    c = jnp.tanh(c @ raw["cw2"] + raw["cb2"])
    value = c @ raw["cw3"] + raw["cb3"]
    return actor_out, value


# TODO(synk): Categorical / MultivariateNormal sampling (dist.sample(), log_prob,
# entropy) has no clean Pallas equivalent; derive them from the returned
# probabilities / mean + action_var in plain JAX.

if __name__ == "__main__":
    key = jax.random.PRNGKey(0)
    k_params, k_state = jax.random.split(key)

    B, STATE_DIM, ACTION_DIM = 8, 32, 4
    raw = init_raw_params(k_params, STATE_DIM, ACTION_DIM)
    fused = fuse_params(raw)
    state = jax.random.normal(k_state, (B, STATE_DIM), jnp.float32)

    # bf16 MXU matmuls + bf16 output slab loosen the tolerance vs the f32 reference.
    TOL = 2e-2

    # Discrete action space (Softmax head), as in the Categorical branch.
    probs, values = actor_critic_forward(state, fused, continuous=False)
    jax.block_until_ready((probs, values))
    ref_probs, ref_values = _reference(state, raw, continuous=False)
    assert probs.shape == (B, ACTION_DIM) and values.shape == (B, 1)
    assert jnp.allclose(probs, ref_probs, atol=TOL, rtol=TOL)
    assert jnp.allclose(values, ref_values, atol=TOL, rtol=TOL)
    # Softmax is normalized with an exact reciprocal in f32 inside the kernel;
    # the only residual deviation is bf16 quantization of the stored probs.
    assert jnp.allclose(jnp.sum(probs, axis=-1), 1.0, atol=5e-3)

    # Continuous action space (Tanh head), as in the MultivariateNormal branch.
    mean, values_c = actor_critic_forward(state, fused, continuous=True)
    jax.block_until_ready((mean, values_c))
    ref_mean, ref_values_c = _reference(state, raw, continuous=True)
    assert mean.shape == (B, ACTION_DIM) and values_c.shape == (B, 1)
    assert jnp.allclose(mean, ref_mean, atol=TOL, rtol=TOL)
    assert jnp.allclose(values_c, ref_values_c, atol=TOL, rtol=TOL)

    print("KERNEL_OK")
</pallas_src>

<mosaic_0001>
module attributes {stable_mosaic.version = 11 : i64} {
  func.func @_actor_critic_kernel(%arg0: i32, %arg1: memref<8x32xf32, #tpu.memory_space<vmem>>, %arg2: memref<32x128xbf16, #tpu.memory_space<vmem>>, %arg3: memref<1x128xf32, #tpu.memory_space<vmem>>, %arg4: memref<128x128xbf16, #tpu.memory_space<vmem>>, %arg5: memref<1x128xf32, #tpu.memory_space<vmem>>, %arg6: memref<128x128xbf16, #tpu.memory_space<vmem>>, %arg7: memref<1x128xf32, #tpu.memory_space<vmem>>, %arg8: memref<8x128xbf16, #tpu.memory_space<vmem>>) attributes {dimension_semantics = [#tpu.dimension_semantics<parallel>], iteration_bounds = array<i64: 1>, scalar_prefetch = 0 : i64, scratch_operands = 0 : i64, tpu.core_type = #tpu.core_type<tc>, window_params = [{transform_indices = @transform_0, window_bounds = array<i64: 8, 32>}, {pipeline_mode = #tpu.pipeline_mode<synchronous>, transform_indices = @transform_1, window_bounds = array<i64: 32, 128>}, {pipeline_mode = #tpu.pipeline_mode<synchronous>, transform_indices = @transform_2, window_bounds = array<i64: 1, 128>}, {pipeline_mode = #tpu.pipeline_mode<synchronous>, transform_indices = @transform_3, window_bounds = array<i64: 128, 128>}, {pipeline_mode = #tpu.pipeline_mode<synchronous>, transform_indices = @transform_4, window_bounds = array<i64: 1, 128>}, {pipeline_mode = #tpu.pipeline_mode<synchronous>, transform_indices = @transform_5, window_bounds = array<i64: 128, 128>}, {pipeline_mode = #tpu.pipeline_mode<synchronous>, transform_indices = @transform_6, window_bounds = array<i64: 1, 128>}, {transform_indices = @transform_7, window_bounds = array<i64: 8, 128>}]} {
    %c0 = arith.constant 0 : index
    %c0_0 = arith.constant 0 : index
    %0 = vector.load %arg1[%c0, %c0_0] : memref<8x32xf32, #tpu.memory_space<vmem>>, vector<8x32xf32>
    %1 = arith.truncf %0 : vector<8x32xf32> to vector<8x32xbf16>
    %c0_1 = arith.constant 0 : index
    %c0_2 = arith.constant 0 : index
    %2 = vector.load %arg2[%c0_1, %c0_2] : memref<32x128xbf16, #tpu.memory_space<vmem>>, vector<32x128xbf16>
    %cst = arith.constant dense<0.000000e+00> : vector<8x128xf32>
    %3 = tpu.matmul %1, %2, %cst {dimension_numbers = #tpu.dot_dimension_numbers<[1], [0], [0], [1], [0, 0, 1, 1], [], []>} : vector<8x32xbf16>, vector<32x128xbf16>, vector<8x128xf32> -> vector<8x128xf32>
    %c0_3 = arith.constant 0 : index
    %c0_4 = arith.constant 0 : index
    %4 = vector.load %arg3[%c0_3, %c0_4] : memref<1x128xf32, #tpu.memory_space<vmem>>, vector<1x128xf32>
    %5 = vector.broadcast %4 : vector<1x128xf32> to vector<8x128xf32>
    %6 = arith.addf %3, %5 : vector<8x128xf32>
    %7 = math.tanh %6 : vector<8x128xf32>
    %8 = arith.truncf %7 : vector<8x128xf32> to vector<8x128xbf16>
    %c0_5 = arith.constant 0 : index
    %c0_6 = arith.constant 0 : index
    %9 = vector.load %arg4[%c0_5, %c0_6] : memref<128x128xbf16, #tpu.memory_space<vmem>>, vector<128x128xbf16>
    %cst_7 = arith.constant dense<0.000000e+00> : vector<8x128xf32>
    %10 = tpu.matmul %8, %9, %cst_7 {dimension_numbers = #tpu.dot_dimension_numbers<[1], [0], [0], [1], [0, 0, 1, 1], [], []>} : vector<8x128xbf16>, vector<128x128xbf16>, vector<8x128xf32> -> vector<8x128xf32>
    %c0_8 = arith.constant 0 : index
    %c0_9 = arith.constant 0 : index
    %11 = vector.load %arg5[%c0_8, %c0_9] : memref<1x128xf32, #tpu.memory_space<vmem>>, vector<1x128xf32>
    %12 = vector.broadcast %11 : vector<1x128xf32> to vector<8x128xf32>
    %13 = arith.addf %10, %12 : vector<8x128xf32>
    %14 = math.tanh %13 : vector<8x128xf32>
    %15 = arith.truncf %14 : vector<8x128xf32> to vector<8x128xbf16>
    %c0_10 = arith.constant 0 : index
    %c0_11 = arith.constant 0 : index
    %16 = vector.load %arg6[%c0_10, %c0_11] : memref<128x128xbf16, #tpu.memory_space<vmem>>, vector<128x128xbf16>
    %cst_12 = arith.constant dense<0.000000e+00> : vector<8x128xf32>
    %17 = tpu.matmul %15, %16, %cst_12 {dimension_numbers = #tpu.dot_dimension_numbers<[1], [0], [0], [1], [0, 0, 1, 1], [], []>} : vector<8x128xbf16>, vector<128x128xbf16>, vector<8x128xf32> -> vector<8x128xf32>
    %c0_13 = arith.constant 0 : index
    %c0_14 = arith.constant 0 : index
    %18 = vector.load %arg7[%c0_13, %c0_14] : memref<1x128xf32, #tpu.memory_space<vmem>>, vector<1x128xf32>
    %19 = vector.broadcast %18 : vector<1x128xf32> to vector<8x128xf32>
    %20 = arith.addf %17, %19 : vector<8x128xf32>
    %21 = tpu.iota {dimensions = array<i32: 1>} : vector<8x128xi32>
    %c4_i32 = arith.constant 4 : i32
    %22 = vector.broadcast %c4_i32 : i32 to vector<8x128xi32>
    %23 = arith.cmpi slt, %21, %22 : vector<8x128xi32>
    %cst_15 = arith.constant -1.000000e+30 : f32
    %24 = vector.broadcast %cst_15 : f32 to vector<8x128xf32>
    %25 = arith.select %23, %20, %24 : vector<8x128xi1>, vector<8x128xf32>
    %cst_16 = arith.constant dense<0xFF800000> : vector<8xf32>
    %26 = vector.multi_reduction <maximumf>, %25, %cst_16 [1] : vector<8x128xf32> to vector<8xf32>
    %27 = vector.shape_cast %26 : vector<8xf32> to vector<8x1xf32>
    %28 = vector.broadcast %27 : vector<8x1xf32> to vector<8x128xf32>
    %29 = arith.subf %25, %28 : vector<8x128xf32>
    %30 = math.exp %29 : vector<8x128xf32>
    %cst_17 = arith.constant 0.000000e+00 : f32
    %31 = vector.broadcast %cst_17 : f32 to vector<8x128xf32>
    %32 = arith.select %23, %30, %31 : vector<8x128xi1>, vector<8x128xf32>
    %cst_18 = arith.constant dense<0.000000e+00> : vector<8xf32>
    %33 = vector.multi_reduction <add>, %32, %cst_18 [1] : vector<8x128xf32> to vector<8xf32>
    %34 = vector.shape_cast %33 : vector<8xf32> to vector<8x1xf32>
    %35 = tpu.reciprocal %34 : vector<8x1xf32> -> vector<8x1xf32>
    %36 = vector.broadcast %35 : vector<8x1xf32> to vector<8x128xf32>
    %37 = arith.mulf %32, %36 : vector<8x128xf32>
    %38 = arith.select %23, %37, %20 : vector<8x128xi1>, vector<8x128xf32>
    %39 = arith.truncf %38 : vector<8x128xf32> to vector<8x128xbf16>
    %c0_19 = arith.constant 0 : index
    %c0_20 = arith.constant 0 : index
    %40 = vector.load %arg8[%c0_19, %c0_20] : memref<8x128xbf16, #tpu.memory_space<vmem>>, vector<8x128xbf16>
    tpu.vector_store %arg8[%c0_19, %c0_20], %39 {strides = array<i32>} : memref<8x128xbf16, #tpu.memory_space<vmem>>, vector<8x128xbf16>,
    return
  }
  func.func @transform_0(%arg0: i32) -> (i32, i32) {
    %c0_i32 = arith.constant 0 : i32
    %c0_i32_0 = arith.constant 0 : i32
    return %arg0, %c0_i32 : i32, i32
  }
  func.func @transform_1(%arg0: i32) -> (i32, i32) {
    %c0_i32 = arith.constant 0 : i32
    %c0_i32_0 = arith.constant 0 : i32
    %c0_i32_1 = arith.constant 0 : i32
    return %c0_i32, %c0_i32_0 : i32, i32
  }
  func.func @transform_2(%arg0: i32) -> (i32, i32) {
    %c0_i32 = arith.constant 0 : i32
    %c0_i32_0 = arith.constant 0 : i32
    %c0_i32_1 = arith.constant 0 : i32
    return %c0_i32, %c0_i32_0 : i32, i32
  }
  func.func @transform_3(%arg0: i32) -> (i32, i32) {
    %c0_i32 = arith.constant 0 : i32
    %c0_i32_0 = arith.constant 0 : i32
    %c0_i32_1 = arith.constant 0 : i32
    return %c0_i32, %c0_i32_0 : i32, i32
  }
  func.func @transform_4(%arg0: i32) -> (i32, i32) {
    %c0_i32 = arith.constant 0 : i32
    %c0_i32_0 = arith.constant 0 : i32
    %c0_i32_1 = arith.constant 0 : i32
    return %c0_i32, %c0_i32_0 : i32, i32
  }
  func.func @transform_5(%arg0: i32) -> (i32, i32) {
    %c0_i32 = arith.constant 0 : i32
    %c0_i32_0 = arith.constant 0 : i32
    %c0_i32_1 = arith.constant 0 : i32
    return %c0_i32, %c0_i32_0 : i32, i32
  }
  func.func @transform_6(%arg0: i32) -> (i32, i32) {
    %c0_i32 = arith.constant 0 : i32
    %c0_i32_0 = arith.constant 0 : i32
    %c0_i32_1 = arith.constant 0 : i32
    return %c0_i32, %c0_i32_0 : i32, i32
  }
  func.func @transform_7(%arg0: i32) -> (i32, i32) {
    %c0_i32 = arith.constant 0 : i32
    %c0_i32_0 = arith.constant 0 : i32
    return %arg0, %c0_i32 : i32, i32
  }
}

</mosaic_0001>

<llo_original>
// kernel: tpu_custom_call.1
$region0: #{tpu_custom_call.1}
  #allocation0 [shape = 'u32[]', space=smem, size = 0x4, offset = 0x4, fixed_abs, tag = 'smem constant byte address 0x4 - core index']
  #allocation1 [shape = 'u32[144,128]{1,0:T(1,128)}', space=vmem, size = 0x12000, scoped, tag = 'internal scratch']
  %s0 = inlined_call_operand.hbm [shape: f32[8,32], index: 0, kind: input, shape index: {}]
  %s1 = inlined_call_operand.hbm [shape: bf16[32,128], index: 1, kind: input, shape index: {}]
  %s2 = inlined_call_operand.vmem [shape: f32[1,128], index: 2, kind: input, shape index: {}]
  %s3 = inlined_call_operand.hbm [shape: bf16[128,128], index: 3, kind: input, shape index: {}]
  %s4 = inlined_call_operand.vmem [shape: f32[1,128], index: 4, kind: input, shape index: {}]
  %s5 = inlined_call_operand.hbm [shape: bf16[128,128], index: 5, kind: input, shape index: {}]
  %s6 = inlined_call_operand.vmem [shape: f32[1,128], index: 6, kind: input, shape index: {}]
  %s7 = inlined_call_operand.hbm [shape: bf16[8,128], index: 7, kind: output, shape index: {}]
  %s8 = sld [smem:[#allocation0]]
  $region54: #{tpu_custom_call.1} parent=0
    _
  %s10 = ssub.s32 1, %s8
  %s11 = scalar_select 0, %s10, %s8
  $region1: #{tpu_custom_call.1} parent=0
    #allocation2 [shape = 'u8[4096]{0}', space=vmem, size = 0x1000, scoped, tag = 'input window, operand 0, single buffered']
    #allocation3 [shape = 's32[1]{0}', space=sflag, size = 0x4, scoped, tag = 'scoped memory for tpu_custom_call.1']
    #allocation4 [shape = 's32[1]{0}', space=sflag, size = 0x4, scoped, tag = 'scoped memory for tpu_custom_call.1']
    #allocation5 [shape = 'u8[8192]{0}', space=vmem, size = 0x2000, scoped, tag = 'input window, operand 1, single buffered']
    #allocation6 [shape = 's32[1]{0}', space=sflag, size = 0x4, scoped, tag = 'scoped memory for tpu_custom_call.1']
    #allocation7 [shape = 'u8[32768]{0}', space=vmem, size = 0x8000, scoped, tag = 'input window, operand 3, single buffered']
    #allocation8 [shape = 'u8[32768]{0}', space=vmem, size = 0x8000, scoped, tag = 'input window, operand 5, single buffered']
    #allocation9 [shape = 's32[1]{0}', space=sflag, size = 0x4, scoped, tag = 'scoped memory for tpu_custom_call.1']
    #allocation10 [shape = 'u8[2048]{0}', space=vmem, size = 0x800, scoped, tag = 'output window, operand 0, single buffered']
    %12 = vsyncpa [#allocation3], 0
    %13 = vsyncpa [#allocation6], 0
    %14 = vsyncpa [#allocation9], 0
    %15 = vsyncpa [#allocation4], 0
    // Predicated region
    $region2: #{tpu_custom_call.1} parent=1 // pred_check
      _
    $region3: #{tpu_custom_call.1} parent=1 // pred_check_branch
      %17 = sbr.rel (0) target = $region5
    $region4: #{tpu_custom_call.1} parent=1 // pred_region
      %s19 = ssub.s32 128, 128
      %20 = vsyncadd [#allocation3], %s19
      %s22 = sshll.u32 [#allocation2], 4
      %s23 = int_to_ptr.vmem [resolvable:$true] %s22
      %25 = dma.hbm_to_vmem [thread:$0]  %s0, 128, %s23, [#allocation3]
    $region5: #{tpu_custom_call.1} parent=1 // pred_fallthru
      _
    // Predicated region
    $region6: #{tpu_custom_call.1} parent=1 // pred_check
      _
    $region7: #{tpu_custom_call.1} parent=1 // pred_check_branch
      %27 = sbr.rel (0) target = $region9
    $region8: #{tpu_custom_call.1} parent=1 // pred_region
      %s29 = ssub.s32 256, 256
      %30 = vsyncadd [#allocation6], %s29
      %s31 = sshll.u32 [#allocation5], 4
      %s32 = int_to_ptr.vmem [resolvable:$true] %s31
      %37 = dma.hbm_to_vmem [thread:$0]  %s1, 256, %s32, [#allocation6], 64, 64, 4
    $region9: #{tpu_custom_call.1} parent=1 // pred_fallthru
      _
    // Predicated region
    $region10: #{tpu_custom_call.1} parent=1 // pred_check
      _
    $region11: #{tpu_custom_call.1} parent=1 // pred_check_branch
      %39 = sbr.rel (0) target = $region13
    $region12: #{tpu_custom_call.1} parent=1 // pred_region
      _
    $region13: #{tpu_custom_call.1} parent=1 // pred_fallthru
      _
    // Predicated region
    $region14: #{tpu_custom_call.1} parent=1 // pred_check
      _
    $region15: #{tpu_custom_call.1} parent=1 // pred_check_branch
      %41 = sbr.rel (0) target = $region17
    $region16: #{tpu_custom_call.1} parent=1 // pred_region
      %s43 = ssub.s32 1024, 1024
      %44 = vsyncadd [#allocation6], %s43
      %s45 = sshll.u32 [#allocation7], 4
      %s46 = int_to_ptr.vmem [resolvable:$true] %s45
      %51 = dma.hbm_to_vmem [thread:$0]  %s3, 1024, %s46, [#allocation6], 64, 64, 4
    $region17: #{tpu_custom_call.1} parent=1 // pred_fallthru
      _
    // Predicated region
    $region18: #{tpu_custom_call.1} parent=1 // pred_check
      _
    $region19: #{tpu_custom_call.1} parent=1 // pred_check_branch
      %53 = sbr.rel (0) target = $region21
    $region20: #{tpu_custom_call.1} parent=1 // pred_region
      _
    $region21: #{tpu_custom_call.1} parent=1 // pred_fallthru
      _
    // Predicated region
    $region22: #{tpu_custom_call.1} parent=1 // pred_check
      _
    $region23: #{tpu_custom_call.1} parent=1 // pred_check_branch
      %55 = sbr.rel (0) target = $region25
    $region24: #{tpu_custom_call.1} parent=1 // pred_region
      %s57 = ssub.s32 1024, 1024
      %58 = vsyncadd [#allocation9], %s57
      %s59 = sshll.u32 [#allocation8], 4
      %s60 = int_to_ptr.vmem [resolvable:$true] %s59
      %65 = dma.hbm_to_vmem [thread:$0]  %s5, 1024, %s60, [#allocation9], 64, 64, 4
    $region25: #{tpu_custom_call.1} parent=1 // pred_fallthru
      _
    // Predicated region
    $region26: #{tpu_custom_call.1} parent=1 // pred_check
      _
    $region27: #{tpu_custom_call.1} parent=1 // pred_check_branch
      %67 = sbr.rel (0) target = $region29
    $region28: #{tpu_custom_call.1} parent=1 // pred_region
      _
    $region29: #{tpu_custom_call.1} parent=1 // pred_fallthru
      _
    // Predicated region
    $region30: #{tpu_custom_call.1} parent=1 // pred_check
      _
    $region31: #{tpu_custom_call.1} parent=1 // pred_check_branch
      %69 = sbr.rel (0) target = $region33
    $region32: #{tpu_custom_call.1} parent=1 // pred_region
      %70 = dma.done [#allocation3], 128
    $region33: #{tpu_custom_call.1} parent=1 // pred_fallthru
      _
    // Predicated region
    $region34: #{tpu_custom_call.1} parent=1 // pred_check
      _
    $region35: #{tpu_custom_call.1} parent=1 // pred_check_branch
      %72 = sbr.rel (0) target = $region37
    $region36: #{tpu_custom_call.1} parent=1 // pred_region
      %73 = dma.done [#allocation6], 256
    $region37: #{tpu_custom_call.1} parent=1 // pred_fallthru
      _
    // Predicated region
    $region38: #{tpu_custom_call.1} parent=1 // pred_check
      _
    $region39: #{tpu_custom_call.1} parent=1 // pred_check_branch
      %75 = sbr.rel (0) target = $region41
    $region40: #{tpu_custom_call.1} parent=1 // pred_region
      %76 = dma.done [#allocation6], 1024
    $region41: #{tpu_custom_call.1} parent=1 // pred_fallthru
      _
    // Predicated region
    $region42: #{tpu_custom_call.1} parent=1 // pred_check
      _
    $region43: #{tpu_custom_call.1} parent=1 // pred_check_branch
      %78 = sbr.rel (0) target = $region45
    $region44: #{tpu_custom_call.1} parent=1 // pred_region
      %79 = dma.done [#allocation9], 1024
    $region45: #{tpu_custom_call.1} parent=1 // pred_fallthru
      _
    %v81 = vld [vmem:[#allocation2] sm:$0xff]
    %v82 = vpack.c.bf16 %v81, %v81
    %v83 = vld [vmem:[#allocation5] sm:$0xf]
    %v84 = vld [vmem:[#allocation5 + $0x4] sm:$0xf]
    %v85 = vld [vmem:[#allocation5 + $0x8] sm:$0xf]
    %v86 = vld [vmem:[#allocation5 + $0xc] sm:$0xf]
    %v87 = vld [vmem:[%s2] sm:$0x1]
    %v89 = vlaneseq
    %v90 = vshrl.u32 %v89, 7
    %v91 = vsub.s32 0, %v90
    %v92 = vrot.slane %v87, %v91
    %v98 = vunpack.c.l.b16 %v83
    %v99 = vunpack.c.l.b16 %v84
    %v100 = vunpack.c.l.b16 %v85
    %v101 = vunpack.c.l.b16 %v86
    %v102 = vpack.c.b16 %v99, %v98
    %v103 = vpack.c.b16 %v101, %v100
    %vm106 = vcmask 261120
    %v108 = vsel %vm106, %v82, 0
    %110 = vmatprep.subr.bf16.mxu0 0
    %111 = vmatpush1.bf16.msra.mxu0 0
    %112 = vmatprep.subr.bf16.mxu0 0
    %113 = vmatpush1.bf16.msra.mxu0 0
    %114 = vmatprep.subr.bf16.mxu0 0
    %115 = vmatpush1.bf16.msra.mxu0 0
    %116 = vmatprep.subr.bf16.mxu0 0
    %117 = vmatpush1.bf16.msra.mxu0 0
    %118 = vmatprep.subr.bf16.mxu0 0
    %119 = vmatpush1.bf16.msra.mxu0 0
    %120 = vmatprep.subr.bf16.mxu0 0
    %121 = vmatpush1.bf16.msra.mxu0 0
    %122 = vmatprep.subr.bf16.mxu0 0
    %123 = vmatpush1.bf16.msra.mxu0 %v103
    %124 = vmatprep.subr.bf16.mxu0 0
    %125 = vmatpush1.bf16.msra.mxu0 %v102
    %126 = vmatprep.subr.bf16.mxu0 0
    %127 = vmatpush2.bf16.msra.mxu0 0
    %128 = vmatprep.subr.bf16.mxu0 0
    %129 = vmatpush2.bf16.msra.mxu0 0
    %130 = vmatprep.subr.bf16.mxu0 0
    %131 = vmatpush2.bf16.msra.mxu0 0
    %132 = vmatprep.subr.bf16.mxu0 0
    %133 = vmatpush2.bf16.msra.mxu0 0
    %134 = vmatprep.subr.bf16.mxu0 0
    %135 = vmatpush2.bf16.msra.mxu0 0
    %136 = vmatprep.subr.bf16.mxu0 0
    %137 = vmatpush2.bf16.msra.mxu0 0
    %138 = vmatprep.subr.bf16.mxu0 0
    %139 = vmatpush2.bf16.msra.mxu0 0
    %140 = vmatprep.subr.bf16.mxu0 0
    %141 = vmatpush2.bf16.msra.mxu0 0
    %142 = vmatprep.mubr.bf16.mxu0 0
    %143 = vmatmul.mubr.bf16.gmra.mxu0 %v108
    %v144 = vpop.f32.mrf.mxu0
    %v145 = vadd.f32 %v92, %v144
    %v146 = vpop.f32.mrf.mxu0
    %v147 = vpop.f32.mrf.mxu0
    %v148 = vpop.f32.mrf.mxu0
    %149 = vdwg.mxu0
    %v150 = vtanh.pop %v145
    %v151 = vpack.c.bf16 %v150, %v150
    %v152 = vld [vmem:[#allocation7] sm:$0xf]
    %v153 = vld [vmem:[#allocation7 + $0x4] sm:$0xf]
    %v154 = vld [vmem:[#allocation7 + $0x8] sm:$0xf]
    %v155 = vld [vmem:[#allocation7 + $0xc] sm:$0xf]
    %v156 = vld [vmem:[#allocation7 + $0x10] sm:$0xf]
    %v157 = vld [vmem:[#allocation7 + $0x14] sm:$0xf]
    %v158 = vld [vmem:[#allocation7 + $0x18] sm:$0xf]
    %v159 = vld [vmem:[#allocation7 + $0x1c] sm:$0xf]
    %v160 = vld [vmem:[#allocation7 + $0x20] sm:$0xf]
    %v161 = vld [vmem:[#allocation7 + $0x24] sm:$0xf]
    %v162 = vld [vmem:[#allocation7 + $0x28] sm:$0xf]
    %v163 = vld [vmem:[#allocation7 + $0x2c] sm:$0xf]
    %v164 = vld [vmem:[#allocation7 + $0x30] sm:$0xf]
    %v165 = vld [vmem:[#allocation7 + $0x34] sm:$0xf]
    %v166 = vld [vmem:[#allocation7 + $0x38] sm:$0xf]
    %v167 = vld [vmem:[#allocation7 + $0x3c] sm:$0xf]
    %v168 = vld [vmem:[%s4] sm:$0x1]
    %v170 = vlaneseq
    %v171 = vshrl.u32 %v170, 7
    %v172 = vsub.s32 0, %v171
    %v173 = vrot.slane %v168, %v172
    %v191 = vunpack.c.l.b16 %v152
    %v192 = vunpack.c.l.b16 %v153
    %v193 = vunpack.c.l.b16 %v154
    %v194 = vunpack.c.l.b16 %v155
    %v195 = vunpack.c.l.b16 %v156
    %v196 = vunpack.c.l.b16 %v157
    %v197 = vunpack.c.l.b16 %v158
    %v198 = vunpack.c.l.b16 %v159
    %v199 = vunpack.c.l.b16 %v160
    %v200 = vunpack.c.l.b16 %v161
    %v201 = vunpack.c.l.b16 %v162
    %v202 = vunpack.c.l.b16 %v163
    %v203 = vunpack.c.l.b16 %v164
    %v204 = vunpack.c.l.b16 %v165
    %v205 = vunpack.c.l.b16 %v166
    %v206 = vunpack.c.l.b16 %v167
    %v207 = vpack.c.b16 %v192, %v191
    %v208 = vpack.c.b16 %v194, %v193
    %v209 = vpack.c.b16 %v196, %v195
    %v210 = vpack.c.b16 %v198, %v197
    %v211 = vpack.c.b16 %v200, %v199
    %v212 = vpack.c.b16 %v202, %v201
    %v213 = vpack.c.b16 %v204, %v203
    %v214 = vpack.c.b16 %v206, %v205
    %223 = vmatprep.subr.bf16.mxu0 0
    %224 = vmatpush1.bf16.msra.mxu0 %v214
    %225 = vmatprep.subr.bf16.mxu0 0
    %226 = vmatpush1.bf16.msra.mxu0 %v213
    %227 = vmatprep.subr.bf16.mxu0 0
    %228 = vmatpush1.bf16.msra.mxu0 %v212
    %229 = vmatprep.subr.bf16.mxu0 0
    %230 = vmatpush1.bf16.msra.mxu0 %v211
    %231 = vmatprep.subr.bf16.mxu0 0
    %232 = vmatpush1.bf16.msra.mxu0 %v210
    %233 = vmatprep.subr.bf16.mxu0 0
    %234 = vmatpush1.bf16.msra.mxu0 %v209
    %235 = vmatprep.subr.bf16.mxu0 0
    %236 = vmatpush1.bf16.msra.mxu0 %v208
    %237 = vmatprep.subr.bf16.mxu0 0
    %238 = vmatpush1.bf16.msra.mxu0 %v207
    %239 = vmatprep.subr.bf16.mxu0 0
    %240 = vmatpush2.bf16.msra.mxu0 0
    %241 = vmatprep.subr.bf16.mxu0 0
    %242 = vmatpush2.bf16.msra.mxu0 0
    %243 = vmatprep.subr.bf16.mxu0 0
    %244 = vmatpush2.bf16.msra.mxu0 0
    %245 = vmatprep.subr.bf16.mxu0 0
    %246 = vmatpush2.bf16.msra.mxu0 0
    %247 = vmatprep.subr.bf16.mxu0 0
    %248 = vmatpush2.bf16.msra.mxu0 0
    %249 = vmatprep.subr.bf16.mxu0 0
    %250 = vmatpush2.bf16.msra.mxu0 0
    %251 = vmatprep.subr.bf16.mxu0 0
    %252 = vmatpush2.bf16.msra.mxu0 0
    %253 = vmatprep.subr.bf16.mxu0 0
    %254 = vmatpush2.bf16.msra.mxu0 0
    %255 = vmatprep.mubr.bf16.mxu0 0
    %256 = vmatmul.mubr.bf16.gmra.mxu0 %v151
    %v257 = vpop.f32.mrf.mxu0
    %v258 = vadd.f32 %v173, %v257
    %v259 = vpop.f32.mrf.mxu0
    %v260 = vpop.f32.mrf.mxu0
    %v261 = vpop.f32.mrf.mxu0
    %262 = vdwg.mxu0
    %v263 = vtanh.pop %v258
    %v264 = vpack.c.bf16 %v263, %v263
    %v265 = vld [vmem:[#allocation8] sm:$0xf]
    %v266 = vld [vmem:[#allocation8 + $0x4] sm:$0xf]
    %v267 = vld [vmem:[#allocation8 + $0x8] sm:$0xf]
    %v268 = vld [vmem:[#allocation8 + $0xc] sm:$0xf]
    %v269 = vld [vmem:[#allocation8 + $0x10] sm:$0xf]
    %v270 = vld [vmem:[#allocation8 + $0x14] sm:$0xf]
    %v271 = vld [vmem:[#allocation8 + $0x18] sm:$0xf]
    %v272 = vld [vmem:[#allocation8 + $0x1c] sm:$0xf]
    %v273 = vld [vmem:[#allocation8 + $0x20] sm:$0xf]
    %v274 = vld [vmem:[#allocation8 + $0x24] sm:$0xf]
    %v275 = vld [vmem:[#allocation8 + $0x28] sm:$0xf]
    %v276 = vld [vmem:[#allocation8 + $0x2c] sm:$0xf]
    %v277 = vld [vmem:[#allocation8 + $0x30] sm:$0xf]
    %v278 = vld [vmem:[#allocation8 + $0x34] sm:$0xf]
    %v279 = vld [vmem:[#allocation8 + $0x38] sm:$0xf]
    %v280 = vld [vmem:[#allocation8 + $0x3c] sm:$0xf]
    %v281 = vld [vmem:[%s6] sm:$0x1]
    %v283 = vlaneseq
    %v284 = vshrl.u32 %v283, 7
    %v285 = vsub.s32 0, %v284
    %v286 = vrot.slane %v281, %v285
    %v304 = vunpack.c.l.b16 %v265
    %v305 = vunpack.c.l.b16 %v266
    %v306 = vunpack.c.l.b16 %v267
    %v307 = vunpack.c.l.b16 %v268
    %v308 = vunpack.c.l.b16 %v269
    %v309 = vunpack.c.l.b16 %v270
    %v310 = vunpack.c.l.b16 %v271
    %v311 = vunpack.c.l.b16 %v272
    %v312 = vunpack.c.l.b16 %v273
    %v313 = vunpack.c.l.b16 %v274
    %v314 = vunpack.c.l.b16 %v275
    %v315 = vunpack.c.l.b16 %v276
    %v316 = vunpack.c.l.b16 %v277
    %v317 = vunpack.c.l.b16 %v278
    %v318 = vunpack.c.l.b16 %v279
    %v319 = vunpack.c.l.b16 %v280
    %v320 = vpack.c.b16 %v305, %v304
    %v321 = vpack.c.b16 %v307, %v306
    %v322 = vpack.c.b16 %v309, %v308
    %v323 = vpack.c.b16 %v311, %v310
    %v324 = vpack.c.b16 %v313, %v312
    %v325 = vpack.c.b16 %v315, %v314
    %v326 = vpack.c.b16 %v317, %v316
    %v327 = vpack.c.b16 %v319, %v318
    %336 = vmatprep.subr.bf16.mxu0 0
    %337 = vmatpush1.bf16.msra.mxu0 %v327
    %338 = vmatprep.subr.bf16.mxu0 0
    %339 = vmatpush1.bf16.msra.mxu0 %v326
    %340 = vmatprep.subr.bf16.mxu0 0
    %341 = vmatpush1.bf16.msra.mxu0 %v325
    %342 = vmatprep.subr.bf16.mxu0 0
    %343 = vmatpush1.bf16.msra.mxu0 %v324
    %344 = vmatprep.subr.bf16.mxu0 0
    %345 = vmatpush1.bf16.msra.mxu0 %v323
    %346 = vmatprep.subr.bf16.mxu0 0
    %347 = vmatpush1.bf16.msra.mxu0 %v322
    %348 = vmatprep.subr.bf16.mxu0 0
    %349 = vmatpush1.bf16.msra.mxu0 %v321
    %350 = vmatprep.subr.bf16.mxu0 0
    %351 = vmatpush1.bf16.msra.mxu0 %v320
    %352 = vmatprep.subr.bf16.mxu0 0
    %353 = vmatpush2.bf16.msra.mxu0 0
    %354 = vmatprep.subr.bf16.mxu0 0
    %355 = vmatpush2.bf16.msra.mxu0 0
    %356 = vmatprep.subr.bf16.mxu0 0
    %357 = vmatpush2.bf16.msra.mxu0 0
    %358 = vmatprep.subr.bf16.mxu0 0
    %359 = vmatpush2.bf16.msra.mxu0 0
    %360 = vmatprep.subr.bf16.mxu0 0
    %361 = vmatpush2.bf16.msra.mxu0 0
    %362 = vmatprep.subr.bf16.mxu0 0
    %363 = vmatpush2.bf16.msra.mxu0 0
    %364 = vmatprep.subr.bf16.mxu0 0
    %365 = vmatpush2.bf16.msra.mxu0 0
    %366 = vmatprep.subr.bf16.mxu0 0
    %367 = vmatpush2.bf16.msra.mxu0 0
    %368 = vmatprep.mubr.bf16.mxu0 0
    %369 = vmatmul.mubr.bf16.gmra.mxu0 %v264
    %v370 = vpop.f32.mrf.mxu0
    %v371 = vadd.f32 %v286, %v370
    %v372 = vpop.f32.mrf.mxu0
    %v373 = vpop.f32.mrf.mxu0
    %v374 = vpop.f32.mrf.mxu0
    %375 = vdwg.mxu0
    %v376 = vlaneseq
    %v377 = vand.u32 %v376, 127
    %vm378 = vcmp.lt.s32.totalorder %v377, 4
    %v379 = vsel %vm378, %v371, -1e+30
    %380 = vmax.xlane.f32.xlu0 %v379
    %v381 = vpop.xlane.xlu0 %380
    %v382 = vsub.f32 %v379, %v381
    %v383 = vmul.f32 %v382, 1.442695
    %v384 = vpow.pop %v383
    %v385 = vsel %vm378, %v384, 0.0
    %386 = vadd.xlane.f32.xlu0 %v385
    %v387 = vpop.xlane.xlu0 %386
    %v388 = vrcp.pop %v387
    %v389 = vmul.f32 %v385, %v388
    %v390 = vsel %vm378, %v389, %v371
    %v391 = vpack.c.bf16 %v390, %v390
    %392 = vst [vmem:[#allocation10] sm:$0xf] %v391
    // Predicated region
    $region46: #{tpu_custom_call.1} parent=1 // pred_check
      _
    $region47: #{tpu_custom_call.1} parent=1 // pred_check_branch
      %394 = sbr.rel (0) target = $region49
    $region48: #{tpu_custom_call.1} parent=1 // pred_region
      %s396 = ssub.s32 64, 64
      %397 = vsyncadd [#allocation4], %s396
      %s399 = sshll.u32 [#allocation10], 4
      %s400 = int_to_ptr.vmem [resolvable:$true] %s399
      %402 = dma.vmem_to_hbm [thread:$0]  %s400, 64, %s7, [#allocation4]
    $region49: #{tpu_custom_call.1} parent=1 // pred_fallthru
      _
    // Predicated region
    $region50: #{tpu_custom_call.1} parent=1 // pred_check
      _
    $region51: #{tpu_custom_call.1} parent=1 // pred_check_branch
      %404 = sbr.rel (0) target = $region53
    $region52: #{tpu_custom_call.1} parent=1 // pred_region
      %405 = dma.done [#allocation4], 64
    $region53: #{tpu_custom_call.1} parent=1 // pred_fallthru
      _
    %406 = vsyncpa [#allocation3], 1
    %407 = vsyncpa [#allocation6], 1
    %408 = vsyncpa [#allocation9], 1
    %409 = vsyncpa [#allocation4], 1

</llo_original>
